<compile_context>
chip_gen: v5e
topology: v5e:2x2
jax: 0.10.0
libtpu: 0.0.40
codegen_flags: <defaults>
</compile_context>

<pallas_src>
import functools

import jax
import jax.numpy as jnp
from jax.experimental import pallas as pl
from jax.experimental.pallas import tpu as pltpu


def _soft_target_kernel(s_ref, t_ref, o_ref, *, T: float, N: int, tile_n: int):
    i = pl.program_id(0)

    inv_T = 1.0 / T
    s = s_ref[...].astype(jnp.float32) * inv_T
    t = t_ref[...].astype(jnp.float32) * inv_T

    # Student log-softmax: only the per-row log-sum-exp is needed.
    s_max = jnp.max(s, axis=1, keepdims=True)
    s_shift = s - s_max
    s_sum = jnp.sum(jnp.exp(s_shift), axis=1, keepdims=True)          # (tile_n, 1)

    # Teacher softmax pieces (no full-tile p_t / log_p_t materialized).
    t_max = jnp.max(t, axis=1, keepdims=True)
    t_shift = t - t_max
    t_exp = jnp.exp(t_shift)
    t_sum = jnp.sum(t_exp, axis=1, keepdims=True)                     # (tile_n, 1)

    # sum_c  exp(t_shift) * (t_shift - s_shift)                       (tile_n, 1)
    num = jnp.sum(t_exp * (t_shift - s_shift), axis=1, keepdims=True)

    # Per-row KL; 1/t_sum and the single log are applied per row,
    # post-reduction (tiny (tile_n, 1) operands).
    inv_t_sum = pl.reciprocal(t_sum, approx=False)
    kl_row = num * inv_t_sum + jnp.log(s_sum * inv_t_sum)             # (tile_n, 1)

    # Mask padded rows of the last (remainder) tile.  Statically skipped when
    # the batch divides evenly.
    if N % tile_n != 0:
        row_idx = i * tile_n + jax.lax.broadcasted_iota(jnp.int32, (tile_n, 1), 0)
        kl_row = jnp.where(row_idx < N, kl_row, 0.0)

    partial = jnp.sum(kl_row)
    # Lane-dense (1, 8, 128) block, same scalar in every slot; wrapper reads
    # [:, 0, 0].  Keeps the store unmasked and the BlockSpec (8,128)-aligned.
    o_ref[...] = jnp.full(o_ref.shape, partial, dtype=jnp.float32)


def _pick_tile_n(N: int, C: int, itemsize: int) -> int:
    """Largest row tile keeping each pipelined input buffer <= ~1 MiB
    (2 inputs x 2 buffers + f32 intermediates stay well inside every
    generation's scoped VMEM, v7x included)."""
    tile_bytes = 1 * 1024 * 1024
    t = max(8, min(1024, tile_bytes // max(C * itemsize, 1)))
    align = 16 if itemsize == 2 else 8        # bf16 packs 2 rows per sublane
    t = max(align, (t // align) * align)
    return N if N <= t else t


def soft_target_loss(out_s: jax.Array, out_t: jax.Array, T: float, *,
                     tile_n: int | None = None) -> jax.Array:
    assert out_s.shape == out_t.shape and out_s.ndim == 2
    N, C = out_s.shape
    if tile_n is None:
        tile_n = _pick_tile_n(N, C, out_s.dtype.itemsize)
    tile_n = min(tile_n, N)
    num_tiles = (N + tile_n - 1) // tile_n

    kernel = functools.partial(_soft_target_kernel, T=float(T), N=N,
                               tile_n=tile_n)
    partials = pl.pallas_call(
        kernel,
        out_shape=jax.ShapeDtypeStruct((num_tiles, 8, 128), jnp.float32),
        grid=(num_tiles,),
        in_specs=[
            pl.BlockSpec((tile_n, C), lambda i: (i, 0)),
            pl.BlockSpec((tile_n, C), lambda i: (i, 0)),
        ],
        out_specs=pl.BlockSpec((1, 8, 128), lambda i: (i, 0, 0)),
        compiler_params=pltpu.CompilerParams(
            dimension_semantics=("parallel",),
            vmem_limit_bytes=32 * 1024 * 1024,
        ),
    )(out_s, out_t)

    # Tiny final reduction + batchmean / temperature scaling in plain JAX,
    # using the TRUE batch size N.
    return jnp.sum(partials[:, 0, 0]) * (float(T) * float(T) / N)


def _reference(out_s, out_t, T):
    # Pure-JAX reference (matches F.kl_div(..., reduction='batchmean') * T*T).
    log_p_s = jax.nn.log_softmax(out_s / T, axis=1)
    p_t = jax.nn.softmax(out_t / T, axis=1)
    log_p_t = jax.nn.log_softmax(out_t / T, axis=1)
    return jnp.sum(p_t * (log_p_t - log_p_s)) / out_s.shape[0] * T * T


if __name__ == "__main__":
    T = 4.0
    key = jax.random.PRNGKey(0)
    k1, k2, k3, k4 = jax.random.split(key, 4)

    # Small shape implied by the module: (batch, classes) student/teacher logits.
    N, C = 8, 32
    out_s = jax.random.normal(k1, (N, C), dtype=jnp.float32)
    out_t = jax.random.normal(k2, (N, C), dtype=jnp.float32)
    loss = jax.block_until_ready(soft_target_loss(out_s, out_t, T))
    ref = _reference(out_s, out_t, T)
    assert jnp.allclose(loss, ref, rtol=1e-5, atol=1e-5), (loss, ref)

    # Exercise the multi-tile grid + remainder-row masking path.
    out_s2 = jax.random.normal(k3, (300, 256), dtype=jnp.float32)
    out_t2 = jax.random.normal(k4, (300, 256), dtype=jnp.float32)
    loss2 = jax.block_until_ready(soft_target_loss(out_s2, out_t2, T, tile_n=128))
    ref2 = _reference(out_s2, out_t2, T)
    assert jnp.allclose(loss2, ref2, rtol=1e-5, atol=1e-5), (loss2, ref2)

    print("KERNEL_OK")
</pallas_src>

<mosaic_0001>
module attributes {stable_mosaic.version = 11 : i64} {
  func.func @_soft_target_kernel(%arg0: i32, %arg1: memref<8x32xf32, #tpu.memory_space<vmem>>, %arg2: memref<8x32xf32, #tpu.memory_space<vmem>>, %arg3: memref<1x8x128xf32, #tpu.memory_space<vmem>>) attributes {dimension_semantics = [#tpu.dimension_semantics<parallel>], iteration_bounds = array<i64: 1>, scalar_prefetch = 0 : i64, scratch_operands = 0 : i64, tpu.core_type = #tpu.core_type<tc>, window_params = [{transform_indices = @transform_0, window_bounds = array<i64: 8, 32>}, {transform_indices = @transform_1, window_bounds = array<i64: 8, 32>}, {transform_indices = @transform_2, window_bounds = array<i64: 1, 8, 128>}]} {
    %c0 = arith.constant 0 : index
    %c0_0 = arith.constant 0 : index
    %0 = vector.load %arg1[%c0, %c0_0] : memref<8x32xf32, #tpu.memory_space<vmem>>, vector<8x32xf32>
    %cst = arith.constant 2.500000e-01 : f32
    %1 = vector.broadcast %cst : f32 to vector<8x32xf32>
    %2 = arith.mulf %0, %1 : vector<8x32xf32>
    %c0_1 = arith.constant 0 : index
    %c0_2 = arith.constant 0 : index
    %3 = vector.load %arg2[%c0_1, %c0_2] : memref<8x32xf32, #tpu.memory_space<vmem>>, vector<8x32xf32>
    %cst_3 = arith.constant 2.500000e-01 : f32
    %4 = vector.broadcast %cst_3 : f32 to vector<8x32xf32>
    %5 = arith.mulf %3, %4 : vector<8x32xf32>
    %cst_4 = arith.constant dense<0xFF800000> : vector<8xf32>
    %6 = vector.multi_reduction <maximumf>, %2, %cst_4 [1] : vector<8x32xf32> to vector<8xf32>
    %7 = vector.shape_cast %6 : vector<8xf32> to vector<8x1xf32>
    %8 = vector.broadcast %7 : vector<8x1xf32> to vector<8x32xf32>
    %9 = arith.subf %2, %8 : vector<8x32xf32>
    %10 = math.exp %9 : vector<8x32xf32>
    %cst_5 = arith.constant dense<0.000000e+00> : vector<8xf32>
    %11 = vector.multi_reduction <add>, %10, %cst_5 [1] : vector<8x32xf32> to vector<8xf32>
    %12 = vector.shape_cast %11 : vector<8xf32> to vector<8x1xf32>
    %cst_6 = arith.constant dense<0xFF800000> : vector<8xf32>
    %13 = vector.multi_reduction <maximumf>, %5, %cst_6 [1] : vector<8x32xf32> to vector<8xf32>
    %14 = vector.shape_cast %13 : vector<8xf32> to vector<8x1xf32>
    %15 = vector.broadcast %14 : vector<8x1xf32> to vector<8x32xf32>
    %16 = arith.subf %5, %15 : vector<8x32xf32>
    %17 = math.exp %16 : vector<8x32xf32>
    %cst_7 = arith.constant dense<0.000000e+00> : vector<8xf32>
    %18 = vector.multi_reduction <add>, %17, %cst_7 [1] : vector<8x32xf32> to vector<8xf32>
    %19 = vector.shape_cast %18 : vector<8xf32> to vector<8x1xf32>
    %20 = arith.subf %16, %9 : vector<8x32xf32>
    %21 = arith.mulf %17, %20 : vector<8x32xf32>
    %cst_8 = arith.constant dense<0.000000e+00> : vector<8xf32>
    %22 = vector.multi_reduction <add>, %21, %cst_8 [1] : vector<8x32xf32> to vector<8xf32>
    %23 = vector.shape_cast %22 : vector<8xf32> to vector<8x1xf32>
    %24 = tpu.reciprocal %19 : vector<8x1xf32> -> vector<8x1xf32>
    %25 = arith.mulf %23, %24 : vector<8x1xf32>
    %26 = arith.mulf %12, %24 : vector<8x1xf32>
    %27 = math.log %26 : vector<8x1xf32>
    %28 = arith.addf %25, %27 : vector<8x1xf32>
    %29 = vector.shape_cast %28 : vector<8x1xf32> to vector<1x8x1xf32>
    %cst_9 = arith.constant dense<0.000000e+00> : vector<1xf32>
    %30 = vector.multi_reduction <add>, %29, %cst_9 [1, 2] : vector<1x8x1xf32> to vector<1xf32>
    %31 = vector.shape_cast %30 : vector<1xf32> to vector<1x1x1xf32>
    %32 = vector.extract %31[0, 0, 0] : f32 from vector<1x1x1xf32>
    %33 = vector.broadcast %32 : f32 to vector<1x8x128xf32>
    %c0_10 = arith.constant 0 : index
    %c0_11 = arith.constant 0 : index
    %c0_12 = arith.constant 0 : index
    %34 = vector.load %arg3[%c0_10, %c0_11, %c0_12] : memref<1x8x128xf32, #tpu.memory_space<vmem>>, vector<1x8x128xf32>
    tpu.vector_store %arg3[%c0_10, %c0_11, %c0_12], %33 {strides = array<i32>} : memref<1x8x128xf32, #tpu.memory_space<vmem>>, vector<1x8x128xf32>,
    return
  }
  func.func @transform_0(%arg0: i32) -> (i32, i32) {
    %c0_i32 = arith.constant 0 : i32
    %c0_i32_0 = arith.constant 0 : i32
    return %arg0, %c0_i32 : i32, i32
  }
  func.func @transform_1(%arg0: i32) -> (i32, i32) {
    %c0_i32 = arith.constant 0 : i32
    %c0_i32_0 = arith.constant 0 : i32
    return %arg0, %c0_i32 : i32, i32
  }
  func.func @transform_2(%arg0: i32) -> (i32, i32, i32) {
    %c0_i32 = arith.constant 0 : i32
    %c0_i32_0 = arith.constant 0 : i32
    %c0_i32_1 = arith.constant 0 : i32
    return %arg0, %c0_i32, %c0_i32_0 : i32, i32, i32
  }
}

</mosaic_0001>

<llo_original>
// kernel: tpu_custom_call.1
$region0: #{tpu_custom_call.1}
  #allocation0 [shape = 'u32[]', space=smem, size = 0x4, offset = 0x4, fixed_abs, tag = 'smem constant byte address 0x4 - core index']
  #allocation1 [shape = 'u32[72,128]{1,0:T(1,128)}', space=vmem, size = 0x9000, scoped, tag = 'internal scratch']
  %s0 = inlined_call_operand.hbm [shape: f32[8,32], index: 0, kind: input, shape index: {}]
  %s1 = inlined_call_operand.hbm [shape: f32[8,32], index: 1, kind: input, shape index: {}]
  %s2 = inlined_call_operand.hbm [shape: f32[1,8,128], index: 2, kind: output, shape index: {}]
  %s3 = sld [smem:[#allocation0]]
  $region26: #{tpu_custom_call.1} parent=0
    _
  %s5 = ssub.s32 1, %s3
  %s6 = scalar_select 0, %s5, %s3
  $region1: #{tpu_custom_call.1} parent=0
    #allocation2 [shape = 'u8[4096]{0}', space=vmem, size = 0x1000, scoped, tag = 'input window, operand 0, single buffered']
    #allocation3 [shape = 's32[1]{0}', space=sflag, size = 0x4, scoped, tag = 'scoped memory for tpu_custom_call.1']
    #allocation4 [shape = 's32[1]{0}', space=sflag, size = 0x4, scoped, tag = 'scoped memory for tpu_custom_call.1']
    #allocation5 [shape = 'u8[4096]{0}', space=vmem, size = 0x1000, scoped, tag = 'input window, operand 1, single buffered']
    #allocation6 [shape = 's32[1]{0}', space=sflag, size = 0x4, scoped, tag = 'scoped memory for tpu_custom_call.1']
    #allocation7 [shape = 'u8[4096]{0}', space=vmem, size = 0x1000, scoped, tag = 'output window, operand 0, single buffered']
    %7 = vsyncpa [#allocation3], 0
    %8 = vsyncpa [#allocation6], 0
    %9 = vsyncpa [#allocation4], 0
    // Predicated region
    $region2: #{tpu_custom_call.1} parent=1 // pred_check
      _
    $region3: #{tpu_custom_call.1} parent=1 // pred_check_branch
      %11 = sbr.rel (0) target = $region5
    $region4: #{tpu_custom_call.1} parent=1 // pred_region
      %13 = vsyncadd [#allocation3], 0
      %s15 = sshll.u32 %s0, 4
      %s16 = int_to_ptr.hbm [resolvable:$true] %s15
      %s17 = sshll.u32 [#allocation2], 4
      %s18 = int_to_ptr.vmem [resolvable:$true] %s17
      %20 = dma.hbm_to_vmem [thread:$0]  %s16, 128, %s18, [#allocation3]
    $region5: #{tpu_custom_call.1} parent=1 // pred_fallthru
      _
    // Predicated region
    $region6: #{tpu_custom_call.1} parent=1 // pred_check
      _
    $region7: #{tpu_custom_call.1} parent=1 // pred_check_branch
      %22 = sbr.rel (0) target = $region9
    $region8: #{tpu_custom_call.1} parent=1 // pred_region
      %24 = vsyncadd [#allocation6], 0
      %s26 = sshll.u32 %s1, 4
      %s27 = int_to_ptr.hbm [resolvable:$true] %s26
      %s28 = sshll.u32 [#allocation5], 4
      %s29 = int_to_ptr.vmem [resolvable:$true] %s28
      %31 = dma.hbm_to_vmem [thread:$0]  %s27, 128, %s29, [#allocation6]
    $region9: #{tpu_custom_call.1} parent=1 // pred_fallthru
      _
    // Predicated region
    $region10: #{tpu_custom_call.1} parent=1 // pred_check
      _
    $region11: #{tpu_custom_call.1} parent=1 // pred_check_branch
      %33 = sbr.rel (0) target = $region13
    $region12: #{tpu_custom_call.1} parent=1 // pred_region
      %35 = dma.done [#allocation3], 128
    $region13: #{tpu_custom_call.1} parent=1 // pred_fallthru
      _
    // Predicated region
    $region14: #{tpu_custom_call.1} parent=1 // pred_check
      _
    $region15: #{tpu_custom_call.1} parent=1 // pred_check_branch
      %37 = sbr.rel (0) target = $region17
    $region16: #{tpu_custom_call.1} parent=1 // pred_region
      %39 = dma.done [#allocation6], 128
    $region17: #{tpu_custom_call.1} parent=1 // pred_fallthru
      _
    %v40 = vld [vmem:[#allocation2] sm:$0xff]
    %v41 = vmul.f32 %v40, 0.25
    %v42 = vld [vmem:[#allocation5] sm:$0xff]
    %v43 = vmul.f32 %v42, 0.25
    %vm44 = vcmask 261120
    %v45 = vsel %vm44, %v41, -inf
    %46 = vmax.xlane.f32.xlu0 %v45
    %v47 = vpop.xlane.xlu0 %46
    %v48 = vsub.f32 %v41, %v47
    %v49 = vmul.f32 %v48, 1.442695
    %v50 = vpow.pop %v49
    %v51 = vsel %vm44, %v50, 0.0
    %52 = vadd.xlane.f32.xlu0 %v51
    %v53 = vpop.xlane.xlu0 %52
    %v54 = vsel %vm44, %v43, -inf
    %55 = vmax.xlane.f32.xlu0 %v54
    %v56 = vpop.xlane.xlu0 %55
    %v57 = vsub.f32 %v43, %v56
    %v58 = vmul.f32 %v57, 1.442695
    %v59 = vpow.pop %v58
    %v60 = vsel %vm44, %v59, 0.0
    %61 = vadd.xlane.f32.xlu0 %v60
    %v62 = vpop.xlane.xlu0 %61
    %v63 = vsub.f32 %v57, %v48
    %v64 = vmul.f32 %v59, %v63
    %v65 = vsel %vm44, %v64, 0.0
    %66 = vadd.xlane.f32.xlu0 %v65
    %v67 = vpop.xlane.xlu0 %66
    %v68 = vrcp.pop %v62
    %v69 = vmul.f32 %v62, %v68
    %v70 = vsub.f32 1.0, %v69
    %v71 = vmul.f32 %v68, %v70
    %v72 = vadd.f32 %v68, %v71
    %vm73 = vweird.f32 %v62
    %vm74 = vweird.f32 %v68
    %vm75 = vmor %vm73, %vm74
    %v76 = vsel %vm75, %v68, %v72
    %v77 = vand.u32 2147483647, %v62
    %vm78 = vcmp.eq.f32.partialorder %v77, 8.507059e+37
    %v79 = vand.u32 %v62, 2147483648
    %v80 = vor.u32 1.1754944e-38, %v79
    %v81 = vsel %vm78, %v80, %v76
    %v82 = vmul.f32 %v67, %v81
    %v83 = vmul.f32 %v53, %v81
    %v84 = vlog2.pop %v83
    %v85 = vmul.f32 %v84, 0.6931472
    %v86 = vadd.f32 %v82, %v85
    %vm87 = vcmask 7168
    %v88 = vsel %vm87, %v86, 0.0
    %89 = vadd.xlane.f32.xlu0 %v88
    %v90 = vpop.xlane.xlu0 %89
    %v91 = vrot.slane %v90, 4
    %v92 = vadd.f32 %v90, %v91
    %v93 = vrot.slane %v92, 2
    %v94 = vadd.f32 %v92, %v93
    %v95 = vrot.slane %v94, 1
    %v96 = vadd.f32 %v94, %v95
    %s97 = vtos %v96
    %v98 = vstv %s97
    %99 = vst [vmem:[#allocation7] sm:$0xff] %v98
    // Predicated region
    $region18: #{tpu_custom_call.1} parent=1 // pred_check
      _
    $region19: #{tpu_custom_call.1} parent=1 // pred_check_branch
      %101 = sbr.rel (0) target = $region21
    $region20: #{tpu_custom_call.1} parent=1 // pred_region
      %103 = vsyncadd [#allocation4], 0
      %s105 = sshll.u32 [#allocation7], 4
      %s106 = int_to_ptr.vmem [resolvable:$true] %s105
      %s107 = sshll.u32 %s2, 4
      %s108 = int_to_ptr.hbm [resolvable:$true] %s107
      %110 = dma.vmem_to_hbm [thread:$0]  %s106, 128, %s108, [#allocation4]
    $region21: #{tpu_custom_call.1} parent=1 // pred_fallthru
      _
    // Predicated region
    $region22: #{tpu_custom_call.1} parent=1 // pred_check
      _
    $region23: #{tpu_custom_call.1} parent=1 // pred_check_branch
      %112 = sbr.rel (0) target = $region25
    $region24: #{tpu_custom_call.1} parent=1 // pred_region
      %114 = dma.done [#allocation4], 128
    $region25: #{tpu_custom_call.1} parent=1 // pred_fallthru
      _
    %115 = vsyncpa [#allocation3], 1
    %116 = vsyncpa [#allocation6], 1
    %117 = vsyncpa [#allocation4], 1

</llo_original>
